<compile_context>
chip_gen: v7x
topology: tpu7x:2x2x1
jax: 0.10.0
libtpu: 0.0.40
codegen_flags: <defaults>
</compile_context>

<pallas_src>
import functools

import jax
import jax.numpy as jnp
from jax.experimental import pallas as pl
from jax.experimental.pallas import tpu as pltpu

LANE = 128  # TPU lane width: the mean/scale halves are each padded to one lane tile.


def _round_up(n, m):
    return (n + m - 1) // m * m


def _make_kernel(half, out_dim):
    """half = lane offset of the scale columns (128); out_dim = real output width."""

    def gaussian_head_kernel(x_ref, w_ref, b_ref, eps_ref, o_ref):
        # x:   (M, in)        f32   (cast to bf16 here; avoids a separate XLA cast op)
        # w:   (in, 2*half)   bf16  fused [mean | scale] weight, zero-padded lanes
        # b:   (1, 2*half)    f32   fused bias
        # eps: (M, out_dim)   f32   standard-normal noise (natural shape, no padding)
        # o:   (M, out_dim)   f32
        x = x_ref[...].astype(jnp.bfloat16)
        # One MXU matmul (bf16 inputs, f32 accumulation) + bias.
        y = jnp.dot(x, w_ref[...], preferred_element_type=jnp.float32) + b_ref[...]
        # Split at the 128-lane tile boundary (mean half / scale half): tile-aligned, free.
        mean = y[:, :out_dim]
        # Matches the PyTorch module: scale = exp(y_scale + 1e-6)  (NOT exp(y)+1e-6).
        scale = jnp.exp(y[:, half:half + out_dim] + 1e-6)
        o_ref[...] = (mean + scale * eps_ref[...]).astype(o_ref.dtype)

    return gaussian_head_kernel


def prepare_params(weight, bias, output_dim, *, param_dtype=jnp.bfloat16):
    """One-time repack of nn.Linear params into the fused kernel layout (never per call).

    weight: (2*output_dim, input_dim)  torch layout
    bias:   (2*output_dim,)
    Returns w (in, 2*half) bf16, b (1, 2*half) f32 with half = round_up(output_dim, 128).
    """
    in_dim = weight.shape[1]
    half = _round_up(output_dim, LANE)
    w = jnp.zeros((in_dim, 2 * half), param_dtype)
    w = w.at[:, :output_dim].set(weight[:output_dim].T.astype(param_dtype))
    w = w.at[:, half:half + output_dim].set(weight[output_dim:].T.astype(param_dtype))
    b = jnp.zeros((1, 2 * half), jnp.float32)
    b = b.at[:, :output_dim].set(bias[:output_dim].astype(jnp.float32))
    b = b.at[:, half:half + output_dim].set(bias[output_dim:].astype(jnp.float32))
    return w, b


@functools.partial(jax.jit, static_argnames=("output_dim",))
def gaussian_head_forward(x, eps, w, b, *, output_dim):
    """x: (input_dim,) or (M, input_dim) f32; eps: (output_dim,) or (M, output_dim) f32."""
    squeeze = x.ndim == 1
    if squeeze:
        x = x[None, :]
        eps = eps[None, :]
    m, in_dim = x.shape
    half = w.shape[1] // 2  # static python int

    cost = pl.CostEstimate(
        flops=2 * m * in_dim * 2 * output_dim,          # real columns only
        transcendentals=m * output_dim,
        bytes_accessed=(x.size * 4 + w.size * 2 + b.size * 4
                        + eps.size * 4 + m * output_dim * 4),
    )

    out = pl.pallas_call(
        _make_kernel(half, output_dim),
        out_shape=jax.ShapeDtypeStruct((m, output_dim), jnp.float32),
        in_specs=[pl.BlockSpec(memory_space=pltpu.MemorySpace.VMEM)] * 4,
        out_specs=pl.BlockSpec(memory_space=pltpu.MemorySpace.VMEM),
        cost_estimate=cost,
    )(x.astype(jnp.float32), w, b, eps.astype(jnp.float32))

    if squeeze:
        out = out[0]
    return out


def init_params(key, input_dim, output_dim):
    """Deterministic parameter init matching nn.Linear + orthogonal_ weight."""
    kw, kb = jax.random.split(key)
    two_out = 2 * output_dim
    weight = jax.nn.initializers.orthogonal(scale=1.0)(kw, (two_out, input_dim), jnp.float32)
    bound = 1.0 / jnp.sqrt(jnp.float32(input_dim))
    bias = jax.random.uniform(kb, (two_out,), jnp.float32, minval=-bound, maxval=bound)
    return weight, bias


def _reference(x, eps, weight, bias, output_dim):
    """Pure-JAX reference with the same bf16 rounding as the kernel's MXU path."""
    xb = x.astype(jnp.bfloat16).astype(jnp.float32)
    wb = weight.astype(jnp.bfloat16).astype(jnp.float32)
    y = xb @ wb.T + bias  # (..., 2*output_dim)
    mean = y[..., :output_dim]
    scale = jnp.exp(y[..., output_dim:] + 1e-6)
    return mean + scale * eps


if __name__ == "__main__":
    input_dim = 32
    output_dim = 16

    key = jax.random.PRNGKey(0)
    k_param, k_x, k_eps, k_xb, k_epsb = jax.random.split(key, 5)

    weight, bias = init_params(k_param, input_dim, output_dim)
    w, b = prepare_params(weight, bias, output_dim)  # one-time repack (fused layout)

    # 1) Single-vector forward (exact module semantics: x is 1-D).
    x = jax.random.normal(k_x, (input_dim,), jnp.float32)
    eps = jax.random.normal(k_eps, (output_dim,), jnp.float32)  # rsample noise
    out = gaussian_head_forward(x, eps, w, b, output_dim=output_dim)
    jax.block_until_ready(out)
    ref = _reference(x, eps, weight, bias, output_dim)
    assert out.shape == (output_dim,)
    assert jnp.allclose(out, ref, atol=1e-3, rtol=1e-3), (out, ref)

    # 2) Batched forward (same kernel, M rows feed the MXU together).
    M = 8
    xb = jax.random.normal(k_xb, (M, input_dim), jnp.float32)
    epsb = jax.random.normal(k_epsb, (M, output_dim), jnp.float32)
    outb = gaussian_head_forward(xb, epsb, w, b, output_dim=output_dim)
    jax.block_until_ready(outb)
    refb = _reference(xb, epsb, weight, bias, output_dim)
    assert outb.shape == (M, output_dim)
    assert jnp.allclose(outb, refb, atol=1e-3, rtol=1e-3), (outb, refb)

    print("KERNEL_OK")
</pallas_src>

<mosaic_0001>
module attributes {stable_mosaic.version = 11 : i64} {
  func.func @gaussian_head_kernel(%arg0: memref<1x32xf32, #tpu.memory_space<vmem>>, %arg1: memref<32x256xbf16, #tpu.memory_space<vmem>>, %arg2: memref<1x256xf32, #tpu.memory_space<vmem>>, %arg3: memref<1x16xf32, #tpu.memory_space<vmem>>, %arg4: memref<1x16xf32, #tpu.memory_space<vmem>>) attributes {dimension_semantics = [], scalar_prefetch = 0 : i64, scratch_operands = 0 : i64, tpu.core_type = #tpu.core_type<tc>} {
    %c0 = arith.constant 0 : index
    %c0_0 = arith.constant 0 : index
    %0 = vector.load %arg0[%c0, %c0_0] : memref<1x32xf32, #tpu.memory_space<vmem>>, vector<1x32xf32>
    %1 = arith.truncf %0 : vector<1x32xf32> to vector<1x32xbf16>
    %c0_1 = arith.constant 0 : index
    %c0_2 = arith.constant 0 : index
    %2 = vector.load %arg1[%c0_1, %c0_2] : memref<32x256xbf16, #tpu.memory_space<vmem>>, vector<32x256xbf16>
    %cst = arith.constant dense<0.000000e+00> : vector<1x256xf32>
    %3 = tpu.matmul %1, %2, %cst {dimension_numbers = #tpu.dot_dimension_numbers<[1], [0], [0], [1], [0, 0, 1, 1], [], []>} : vector<1x32xbf16>, vector<32x256xbf16>, vector<1x256xf32> -> vector<1x256xf32>
    %c0_3 = arith.constant 0 : index
    %c0_4 = arith.constant 0 : index
    %4 = vector.load %arg2[%c0_3, %c0_4] : memref<1x256xf32, #tpu.memory_space<vmem>>, vector<1x256xf32>
    %5 = arith.addf %3, %4 : vector<1x256xf32>
    %6 = vector.extract_strided_slice %5 {offsets = [0, 0], sizes = [1, 16], strides = [1, 1]} : vector<1x256xf32> to vector<1x16xf32>
    %7 = vector.extract_strided_slice %5 {offsets = [0, 128], sizes = [1, 16], strides = [1, 1]} : vector<1x256xf32> to vector<1x16xf32>
    %cst_5 = arith.constant 9.99999997E-7 : f32
    %8 = vector.broadcast %cst_5 : f32 to vector<1x16xf32>
    %9 = arith.addf %7, %8 : vector<1x16xf32>
    %10 = math.exp %9 : vector<1x16xf32>
    %c0_6 = arith.constant 0 : index
    %c0_7 = arith.constant 0 : index
    %11 = vector.load %arg3[%c0_6, %c0_7] : memref<1x16xf32, #tpu.memory_space<vmem>>, vector<1x16xf32>
    %12 = arith.mulf %10, %11 : vector<1x16xf32>
    %13 = arith.addf %6, %12 : vector<1x16xf32>
    %c0_8 = arith.constant 0 : index
    %c0_9 = arith.constant 0 : index
    %14 = vector.load %arg4[%c0_8, %c0_9] : memref<1x16xf32, #tpu.memory_space<vmem>>, vector<1x16xf32>
    tpu.vector_store %arg4[%c0_8, %c0_9], %13 {strides = array<i32>} : memref<1x16xf32, #tpu.memory_space<vmem>>, vector<1x16xf32>,
    return
  }
}

</mosaic_0001>

<llo_original>
// kernel: gaussian_head_forward.1
$region0: #{gaussian_head_forward.1}
  #allocation0 [shape = 'u32[]', space=smem, size = 0x4, offset = 0x4, fixed_abs, tag = 'smem constant byte address 0x4 - core index']
  #allocation1 [shape = 'u32[144,128]{1,0:T(1,128)}', space=vmem, size = 0x12000, scoped, tag = 'internal scratch']
  %s0 = inlined_call_operand.vmem [shape: f32[1,32], index: 0, kind: input, shape index: {}]
  %s1 = inlined_call_operand.hbm [shape: bf16[32,256], index: 1, kind: input, shape index: {}]
  %s2 = inlined_call_operand.vmem [shape: f32[1,256], index: 2, kind: input, shape index: {}]
  %s3 = inlined_call_operand.vmem [shape: f32[1,16], index: 3, kind: input, shape index: {}]
  %s4 = inlined_call_operand.hbm [shape: f32[1,16], index: 4, kind: output, shape index: {}]
  %s5 = sld [smem:[#allocation0]]
  $region30: #{gaussian_head_forward.1} parent=0
    _
  %s7 = ssub.s32 1, %s5
  %s8 = scalar_select 0, %s7, %s5
  $region1: #{gaussian_head_forward.1} parent=0
    #allocation2 [shape = 'u8[16384]{0}', space=vmem, size = 0x4000, scoped, tag = 'input window, operand 1, single buffered']
    #allocation3 [shape = 's32[1]{0}', space=sflag, size = 0x4, scoped, tag = 'scoped memory for gaussian_head_forward.1']
    #allocation4 [shape = 's32[1]{0}', space=sflag, size = 0x4, scoped, tag = 'scoped memory for gaussian_head_forward.1']
    #allocation5 [shape = 'u8[512]{0}', space=vmem, size = 0x400, scoped, tag = 'output window, operand 0, single buffered']
    %9 = vsyncpa [#allocation3], 0
    %10 = vsyncpa [#allocation4], 0
    // Predicated region
    $region2: #{gaussian_head_forward.1} parent=1 // pred_check
      _
    $region3: #{gaussian_head_forward.1} parent=1 // pred_check_branch
      %12 = sbr.rel (0) target = $region5
    $region4: #{gaussian_head_forward.1} parent=1 // pred_region
      _
    $region5: #{gaussian_head_forward.1} parent=1 // pred_fallthru
      _
    // Predicated region
    $region6: #{gaussian_head_forward.1} parent=1 // pred_check
      _
    $region7: #{gaussian_head_forward.1} parent=1 // pred_check_branch
      %14 = sbr.rel (0) target = $region9
    $region8: #{gaussian_head_forward.1} parent=1 // pred_region
      %s16 = ssub.s32 512, 512
      %17 = vsyncadd [#allocation3], %s16
      %s18 = sshll.u32 [#allocation2], 4
      %s19 = int_to_ptr.vmem [resolvable:$true] %s18
      %24 = dma.hbm_to_vmem [thread:$0]  %s1, 512, %s19, [#allocation3], 128, 128, 8
    $region9: #{gaussian_head_forward.1} parent=1 // pred_fallthru
      _
    // Predicated region
    $region10: #{gaussian_head_forward.1} parent=1 // pred_check
      _
    $region11: #{gaussian_head_forward.1} parent=1 // pred_check_branch
      %26 = sbr.rel (0) target = $region13
    $region12: #{gaussian_head_forward.1} parent=1 // pred_region
      _
    $region13: #{gaussian_head_forward.1} parent=1 // pred_fallthru
      _
    // Predicated region
    $region14: #{gaussian_head_forward.1} parent=1 // pred_check
      _
    $region15: #{gaussian_head_forward.1} parent=1 // pred_check_branch
      %28 = sbr.rel (0) target = $region17
    $region16: #{gaussian_head_forward.1} parent=1 // pred_region
      _
    $region17: #{gaussian_head_forward.1} parent=1 // pred_fallthru
      _
    // Predicated region
    $region18: #{gaussian_head_forward.1} parent=1 // pred_check
      _
    $region19: #{gaussian_head_forward.1} parent=1 // pred_check_branch
      %30 = sbr.rel (0) target = $region21
    $region20: #{gaussian_head_forward.1} parent=1 // pred_region
      %31 = dma.done [#allocation3], 512
    $region21: #{gaussian_head_forward.1} parent=1 // pred_fallthru
      _
    %v33 = vld [vmem:[%s0] sm:$0x1]
    %v34 = vpack.c.bf16 %v33, %v33
    %v35 = vld [vmem:[#allocation2] sm:$0xff]
    %v36 = vld [vmem:[#allocation2 + $0x8] sm:$0xff]
    %v37 = vld [vmem:[#allocation2 + $0x10] sm:$0xff]
    %v38 = vld [vmem:[#allocation2 + $0x18] sm:$0xff]
    %v39 = vld [vmem:[%s2] sm:$0x3]
    %v44 = vunpack.c.l.b16 %v35
    %v45 = vunpack.c.h.b16 %v35
    %v46 = vunpack.c.l.b16 %v36
    %v47 = vunpack.c.h.b16 %v36
    %v48 = vunpack.c.l.b16 %v37
    %v49 = vunpack.c.h.b16 %v37
    %v50 = vunpack.c.l.b16 %v38
    %v51 = vunpack.c.h.b16 %v38
    %v52 = vpack.c.b16 %v46, %v44
    %v53 = vpack.c.b16 %v47, %v45
    %v54 = vpack.c.b16 %v50, %v48
    %v55 = vpack.c.b16 %v51, %v49
    %v61 = vlaneseq
    %v62 = vshrl.u32 %v61, 7
    %v63 = vsub.s32 0, %v62
    %v64 = vrot.slane %v39, %v63
    %v65 = vlaneseq
    %v66 = vshrl.u32 %v65, 7
    %v67 = vsub.s32 1, %v66
    %v68 = vrot.slane %v39, %v67
    %vm71 = vcmask 261120
    %v73 = vsel %vm71, %v34, 0
    %75 = vmatprep.subr.bf16.mxu0 %v53
    %76 = vmatpush1.bf16.msra.mxu0 %v52
    %77 = vmatprep.subr.bf16.mxu0 %v55
    %78 = vmatpush1.bf16.msra.mxu0 %v54
    %79 = vmatprep.subr.bf16.mxu0 0
    %80 = vmatpush1.bf16.msra.mxu0 0
    %81 = vmatprep.subr.bf16.mxu0 0
    %82 = vmatpush1.bf16.msra.mxu0 0
    %83 = vmatprep.subr.bf16.mxu0 0
    %84 = vmatpush1.bf16.msra.mxu0 0
    %85 = vmatprep.subr.bf16.mxu0 0
    %86 = vmatpush1.bf16.msra.mxu0 0
    %87 = vmatprep.subr.bf16.mxu0 0
    %88 = vmatpush1.bf16.msra.mxu0 0
    %89 = vmatprep.subr.bf16.mxu0 0
    %90 = vmatpush1.bf16.msra.mxu0 0
    %91 = vmatprep.subr.bf16.mxu0 0
    %92 = vmatpush1.bf16.msra.mxu0 0
    %93 = vmatprep.subr.bf16.mxu0 0
    %94 = vmatpush1.bf16.msra.mxu0 0
    %95 = vmatprep.subr.bf16.mxu0 0
    %96 = vmatpush1.bf16.msra.mxu0 0
    %97 = vmatprep.subr.bf16.mxu0 0
    %98 = vmatpush1.bf16.msra.mxu0 0
    %99 = vmatprep.subr.bf16.mxu0 0
    %100 = vmatpush1.bf16.msra.mxu0 0
    %101 = vmatprep.subr.bf16.mxu0 0
    %102 = vmatpush1.bf16.msra.mxu0 0
    %103 = vmatprep.subr.bf16.mxu0 0
    %104 = vmatpush1.bf16.msra.mxu0 0
    %105 = vmatprep.subr.bf16.mxu0 0
    %106 = vmatpush1.bf16.msra.mxu0 0
    %107 = vmatprep.mubr.bf16.mxu0 0
    %108 = vmatmul.mubr.bf16.gmra.mrb[0].mxu0 %v73
    %v109 = vpop.f32.mrb[0].mxu0
    %v110 = vadd.f32 %v64, %v109
    %v111 = vpop.f32.mrb[0].mxu0
    %v112 = vadd.f32 %v68, %v111
    %v113 = vpop.f32.mrb[0].mxu0
    %v114 = vpop.f32.mrb[0].mxu0
    %115 = vdwg.mxu0
    %v116 = vadd.f32 %v112, 1e-06
    %v117 = vmul.f32 %v116, 1.442695
    %v118 = vpow.pop %v117
    %v119 = vld [vmem:[%s3] sm:$0x1]
    %v120 = vmul.f32 %v118, %v119
    %v121 = vadd.f32 %v110, %v120
    %vm122 = vcmask 122880
    %123 = vst.msk [vmem:[#allocation5] sm:$0x1] %vm122, %v121
    // Predicated region
    $region22: #{gaussian_head_forward.1} parent=1 // pred_check
      _
    $region23: #{gaussian_head_forward.1} parent=1 // pred_check_branch
      %125 = sbr.rel (0) target = $region25
    $region24: #{gaussian_head_forward.1} parent=1 // pred_region
      %s127 = ssub.s32 16, 16
      %128 = vsyncadd [#allocation4], %s127
      %s130 = sshll.u32 [#allocation5], 4
      %s131 = int_to_ptr.vmem [resolvable:$true] %s130
      %133 = dma.vmem_to_hbm [thread:$0]  %s131, 16, %s4, [#allocation4]
    $region25: #{gaussian_head_forward.1} parent=1 // pred_fallthru
      _
    // Predicated region
    $region26: #{gaussian_head_forward.1} parent=1 // pred_check
      _
    $region27: #{gaussian_head_forward.1} parent=1 // pred_check_branch
      %135 = sbr.rel (0) target = $region29
    $region28: #{gaussian_head_forward.1} parent=1 // pred_region
      %136 = dma.done [#allocation4], 16
    $region29: #{gaussian_head_forward.1} parent=1 // pred_fallthru
      _
    %137 = vsyncpa [#allocation3], 1
    %138 = vsyncpa [#allocation4], 1

</llo_original>
